<compile_context>
chip_gen: v6e
topology: v6e:2x2x1
jax: 0.10.0
libtpu: 0.0.40
codegen_flags: <defaults>
</compile_context>

<pallas_src>
import numpy as np
import jax
import jax.numpy as jnp
from jax import lax
from jax.experimental import pallas as pl
from jax.experimental.pallas import tpu as pltpu

NPAD = 128  # lane-aligned padding for the number of matched (pred, gt) pairs


def _set_criterion_kernel(src_ref, ta_ref, n_ref, alpha_ref, out_ref):
    """src_ref  : (2, NPAD) f32 VMEM — masked+gathered predictions [x; y]
       ta_ref   : (4, NPAD) f32 VMEM — targets/anchors [tx; ty; ax; ay]
       n_ref    : (1,) int32 SMEM    — number of valid matched pairs
       alpha_ref: (1,) f32  SMEM     — L1 / angular mixing weight
       out_ref  : (4,) f32  SMEM     — [loss_bbox, l1_loss, ang_loss, t]
    """
    src = src_ref[...]                                 # (2, NPAD)
    ta = ta_ref[...]                                   # (4, NPAD)

    sx = src[0:1, :]
    sy = src[1:2, :]
    tx = ta[0:1, :]
    ty = ta[1:2, :]
    ax = ta[2:3, :]
    ay = ta[3:4, :]

    # loss_keypoints(): per-point L1 over (x, y).  Row-wise VPU adds — no
    # axis=0 sublane reductions anywhere in the kernel.
    l1 = jnp.abs(sx - tx) + jnp.abs(sy - ty)           # (1, NPAD)

    # angular_loss(): 1 - cosine_similarity(ground_vec, pred_vec), eps=1e-6.
    # sqrt(max(|g|^2*|p|^2, 1e-12)) == max(|g|*|p|, 1e-6) -> single EUP rsqrt.
    gvx = tx - ax
    gvy = ty - ay
    pvx = sx - ax
    pvy = sy - ay
    dot = gvx * pvx + gvy * pvy
    gn2 = gvx * gvx + gvy * gvy
    pn2 = pvx * pvx + pvy * pvy
    cos = dot * lax.rsqrt(jnp.maximum(gn2 * pn2, 1e-12))
    ang = 1.0 - cos                                    # (1, NPAD)

    # Lane-validity from the int32 row count (int compare, no f32 convert).
    lane = lax.broadcasted_iota(jnp.int32, (1, NPAD), 1)
    valid = lane < n_ref[0]                            # (1, NPAD) bool
    # t counts target rows with NO zero coordinate.
    nonzero = jnp.logical_and(tx != 0.0, ty != 0.0)

    # One fused cross-lane reduction for all three sums (was 3 XLU reduces).
    stacked = jnp.concatenate(
        [jnp.where(valid, l1, 0.0),
         jnp.where(valid, ang, 0.0),
         jnp.where(jnp.logical_and(valid, nonzero), 1.0, 0.0)],
        axis=0)                                        # (3, NPAD)
    red = jnp.sum(stacked, axis=1, keepdims=True)      # (3, 1) — single lane reduce
    sum_l1 = jnp.sum(red[0:1, :])                      # trivial (1,1) -> scalar
    sum_ang = jnp.sum(red[1:2, :])
    t = jnp.sum(red[2:3, :])

    alpha = alpha_ref[0]
    inv_t = 1.0 / t
    # sum(loss_bbox) == alpha*sum(l1) + (1-alpha)*sum(ang): 1 divide, 3 muls.
    out_ref[0] = (alpha * sum_l1 + (1.0 - alpha) * sum_ang) * inv_t
    out_ref[1] = sum_l1 * inv_t
    out_ref[2] = sum_ang * inv_t
    out_ref[3] = t


def _run_kernel(src_rows, ta_slab, n_arr, alpha_arr):
    return pl.pallas_call(
        _set_criterion_kernel,
        out_shape=jax.ShapeDtypeStruct((4,), jnp.float32),
        in_specs=[pl.BlockSpec(memory_space=pltpu.MemorySpace.VMEM),   # (2, NPAD)
                  pl.BlockSpec(memory_space=pltpu.MemorySpace.VMEM),   # (4, NPAD)
                  pl.BlockSpec(memory_space=pltpu.MemorySpace.SMEM),   # n  int32
                  pl.BlockSpec(memory_space=pltpu.MemorySpace.SMEM)],  # alpha f32
        out_specs=pl.BlockSpec(memory_space=pltpu.MemorySpace.SMEM),
    )(src_rows, ta_slab, n_arr, alpha_arr)


@jax.jit
def _prepare_and_run(pred_boxes, masks, flat_idx, ta_slab, n, alpha):
    """Single jitted wrapper with STATIC shapes:
       pred_boxes (B,Q,2) f32, masks (B,Q,2) f32, flat_idx (NPAD,) i32,
       ta_slab (4,NPAD) f32, n scalar i32, alpha scalar f32.
       n / the match count never changes a traced shape -> no retracing."""
    B, Q, _ = pred_boxes.shape
    # forward(): pred_boxes = mask * pred_boxes, then gather matched queries.
    pm_t = (masks * pred_boxes).astype(jnp.float32).reshape(B * Q, 2).T  # (2, B*Q)
    src_rows = jnp.take(pm_t, flat_idx, axis=1)        # (2, NPAD) lane-major gather
    n_arr = jnp.asarray(n, jnp.int32).reshape(1)
    alpha_arr = jnp.asarray(alpha, jnp.float32).reshape(1)
    return _run_kernel(src_rows, ta_slab, n_arr, alpha_arr)


def set_criterion_forward(outputs, targets, indices, alpha):
    """JAX/Pallas equivalent of SetCriterion.forward with losses=['keypoints']."""
    pred_boxes = jnp.asarray(outputs['pred_boxes'], jnp.float32)       # (B, Q, 2)
    masks = jnp.stack([jnp.asarray(t['mask'], jnp.float32)
                       for t in targets])                              # (B, Q, 2)
    B, Q = pred_boxes.shape[0], pred_boxes.shape[1]

    # _get_src_permutation_idx + target/anchor gather: host-side numpy glue,
    # padded to NPAD so every device shape is static.
    batch_idx = np.concatenate(
        [np.full(len(src), b, dtype=np.int64) for b, (src, _) in enumerate(indices)])
    src_idx = np.concatenate([np.asarray(src, np.int64) for src, _ in indices])
    n = int(batch_idx.shape[0])
    assert n <= NPAD

    flat_idx = np.zeros((NPAD,), np.int32)
    flat_idx[:n] = (batch_idx * Q + src_idx).astype(np.int32)

    tgt = np.concatenate(
        [np.asarray(targets[b]['bboxes'], np.float32)[np.asarray(ti, np.int64)]
         for b, (_, ti) in enumerate(indices)], axis=0)                # (n, 2)
    anc = np.concatenate(
        [np.asarray(targets[b]['anchors'], np.float32)[np.asarray(ti, np.int64)]
         for b, (_, ti) in enumerate(indices)], axis=0)                # (n, 2)
    ta_slab = np.zeros((4, NPAD), np.float32)                          # lane-major
    ta_slab[0:2, :n] = tgt.T
    ta_slab[2:4, :n] = anc.T

    out = _prepare_and_run(pred_boxes, masks, jnp.asarray(flat_idx),
                           jnp.asarray(ta_slab), np.int32(n), np.float32(alpha))
    return {'loss_bbox': out[0], 'l1_loss': out[1], 'ang_loss': out[2]}


def _reference_numpy(outputs, targets, indices, alpha):
    """Pure-numpy mirror of the PyTorch math (float64) for verification."""
    pred_boxes = np.asarray(outputs['pred_boxes'], np.float64)
    masks = np.stack([np.asarray(t['mask'], np.float64) for t in targets])
    pred_boxes = masks * pred_boxes

    batch_idx = np.concatenate(
        [np.full(len(src), b) for b, (src, _) in enumerate(indices)])
    src_idx = np.concatenate([np.asarray(src) for src, _ in indices])
    src = pred_boxes[batch_idx, src_idx]
    tgt = np.concatenate([np.asarray(targets[b]['bboxes'], np.float64)[np.asarray(ti)]
                          for b, (_, ti) in enumerate(indices)], axis=0)
    anc = np.concatenate([np.asarray(targets[b]['anchors'], np.float64)[np.asarray(ti)]
                          for b, (_, ti) in enumerate(indices)], axis=0)

    gv, pv = tgt - anc, src - anc
    cos = (gv * pv).sum(1) / np.maximum(
        np.linalg.norm(gv, axis=1) * np.linalg.norm(pv, axis=1), 1e-6)
    ang = 1.0 - cos
    l1 = np.abs(src - tgt).sum(1)
    loss_bbox = l1 * alpha + (1 - alpha) * ang
    t = int(np.sum(np.all(tgt != 0.0, axis=1)))
    return {'loss_bbox': loss_bbox.sum() / t,
            'l1_loss': l1.sum() / t,
            'ang_loss': ang.sum() / t}


if __name__ == "__main__":
    key = jax.random.PRNGKey(0)
    B, Q, NGT = 2, 8, 3        # batch, num queries, ground-truth boxes per image
    ALPHA = 0.7                # self.alpha from __init__

    k1, k2, k3, k4 = jax.random.split(key, 4)
    pred_boxes = jax.random.uniform(k1, (B, Q, 2), jnp.float32)           # (B,Q,2)
    mask = (jax.random.uniform(k2, (B, Q, 2)) > 0.1).astype(jnp.float32)  # (B,Q,2)
    bboxes = jax.random.uniform(k3, (B, NGT, 2), jnp.float32,
                                minval=0.1, maxval=0.9)
    # force one target row to contain a zero coordinate (exercises the t count)
    bboxes = bboxes.at[0, 1, 0].set(0.0)
    anchors = bboxes + 0.05 * jax.random.normal(k4, (B, NGT, 2), jnp.float32)

    outputs = {'pred_boxes': pred_boxes}
    targets = [{'bboxes': bboxes[b], 'anchors': anchors[b],
                'mask': mask[b], 'labels': np.arange(NGT)} for b in range(B)]

    # externally supplied (src_query_idx, tgt_box_idx) matching per image
    indices = [(np.array([0, 2, 5]), np.array([0, 1, 2])),
               (np.array([1, 3, 4]), np.array([2, 0, 1]))]

    losses = set_criterion_forward(outputs, targets, indices, ALPHA)
    losses = jax.block_until_ready(losses)
    ref = _reference_numpy(outputs, targets, indices, ALPHA)
    for k in ('loss_bbox', 'l1_loss', 'ang_loss'):
        np.testing.assert_allclose(np.asarray(losses[k]), ref[k],
                                   rtol=2e-4, atol=1e-5)

    # Different match count (n=5): all device shapes stay NPAD-padded, so the
    # jitted wrapper + Pallas kernel are reused without retrace/recompile.
    indices2 = [(np.array([3, 6]), np.array([2, 0])),
                (np.array([0, 2, 7]), np.array([1, 2, 0]))]
    losses2 = jax.block_until_ready(
        set_criterion_forward(outputs, targets, indices2, ALPHA))
    ref2 = _reference_numpy(outputs, targets, indices2, ALPHA)
    for k in ('loss_bbox', 'l1_loss', 'ang_loss'):
        np.testing.assert_allclose(np.asarray(losses2[k]), ref2[k],
                                   rtol=2e-4, atol=1e-5)

    print("KERNEL_OK")
</pallas_src>

<mosaic_0001>
module attributes {stable_mosaic.version = 11 : i64} {
  func.func @_set_criterion_kernel(%arg0: memref<2x128xf32, #tpu.memory_space<vmem>>, %arg1: memref<4x128xf32, #tpu.memory_space<vmem>>, %arg2: memref<1xi32, #tpu.memory_space<smem>>, %arg3: memref<1xf32, #tpu.memory_space<smem>>, %arg4: memref<4xf32, #tpu.memory_space<smem>>) attributes {dimension_semantics = [], scalar_prefetch = 0 : i64, scratch_operands = 0 : i64, tpu.core_type = #tpu.core_type<tc>} {
    %c0 = arith.constant 0 : index
    %c0_0 = arith.constant 0 : index
    %0 = vector.load %arg0[%c0, %c0_0] : memref<2x128xf32, #tpu.memory_space<vmem>>, vector<2x128xf32>
    %c0_1 = arith.constant 0 : index
    %c0_2 = arith.constant 0 : index
    %1 = vector.load %arg1[%c0_1, %c0_2] : memref<4x128xf32, #tpu.memory_space<vmem>>, vector<4x128xf32>
    %2 = vector.extract_strided_slice %0 {offsets = [0, 0], sizes = [1, 128], strides = [1, 1]} : vector<2x128xf32> to vector<1x128xf32>
    %3 = vector.extract_strided_slice %0 {offsets = [1, 0], sizes = [1, 128], strides = [1, 1]} : vector<2x128xf32> to vector<1x128xf32>
    %4 = vector.extract_strided_slice %1 {offsets = [0, 0], sizes = [1, 128], strides = [1, 1]} : vector<4x128xf32> to vector<1x128xf32>
    %5 = vector.extract_strided_slice %1 {offsets = [1, 0], sizes = [1, 128], strides = [1, 1]} : vector<4x128xf32> to vector<1x128xf32>
    %6 = vector.extract_strided_slice %1 {offsets = [2, 0], sizes = [1, 128], strides = [1, 1]} : vector<4x128xf32> to vector<1x128xf32>
    %7 = vector.extract_strided_slice %1 {offsets = [3, 0], sizes = [1, 128], strides = [1, 1]} : vector<4x128xf32> to vector<1x128xf32>
    %8 = arith.subf %2, %4 : vector<1x128xf32>
    %9 = math.absf %8 : vector<1x128xf32>
    %10 = arith.subf %3, %5 : vector<1x128xf32>
    %11 = math.absf %10 : vector<1x128xf32>
    %12 = arith.addf %9, %11 : vector<1x128xf32>
    %13 = arith.subf %4, %6 : vector<1x128xf32>
    %14 = arith.subf %5, %7 : vector<1x128xf32>
    %15 = arith.subf %2, %6 : vector<1x128xf32>
    %16 = arith.subf %3, %7 : vector<1x128xf32>
    %17 = arith.mulf %13, %15 : vector<1x128xf32>
    %18 = arith.mulf %14, %16 : vector<1x128xf32>
    %19 = arith.addf %17, %18 : vector<1x128xf32>
    %20 = arith.mulf %13, %13 : vector<1x128xf32>
    %21 = arith.mulf %14, %14 : vector<1x128xf32>
    %22 = arith.addf %20, %21 : vector<1x128xf32>
    %23 = arith.mulf %15, %15 : vector<1x128xf32>
    %24 = arith.mulf %16, %16 : vector<1x128xf32>
    %25 = arith.addf %23, %24 : vector<1x128xf32>
    %26 = arith.mulf %22, %25 : vector<1x128xf32>
    %cst = arith.constant 9.99999996E-13 : f32
    %27 = vector.broadcast %cst : f32 to vector<1x128xf32>
    %28 = arith.maximumf %26, %27 : vector<1x128xf32>
    %29 = math.rsqrt %28 : vector<1x128xf32>
    %30 = arith.mulf %19, %29 : vector<1x128xf32>
    %cst_3 = arith.constant 1.000000e+00 : f32
    %31 = vector.broadcast %cst_3 : f32 to vector<1x128xf32>
    %32 = arith.subf %31, %30 : vector<1x128xf32>
    %33 = tpu.iota {dimensions = array<i32: 1>} : vector<1x128xi32>
    %c0_4 = arith.constant 0 : index
    %34 = memref.load %arg2[%c0_4] : memref<1xi32, #tpu.memory_space<smem>>
    %35 = vector.broadcast %34 : i32 to vector<1x128xi32>
    %36 = arith.cmpi slt, %33, %35 : vector<1x128xi32>
    %cst_5 = arith.constant 0.000000e+00 : f32
    %37 = vector.broadcast %cst_5 : f32 to vector<1x128xf32>
    %38 = arith.cmpf one, %4, %37 : vector<1x128xf32>
    %cst_6 = arith.constant 0.000000e+00 : f32
    %39 = vector.broadcast %cst_6 : f32 to vector<1x128xf32>
    %40 = arith.cmpf one, %5, %39 : vector<1x128xf32>
    %41 = arith.andi %38, %40 : vector<1x128xi1>
    %cst_7 = arith.constant 0.000000e+00 : f32
    %42 = vector.broadcast %cst_7 : f32 to vector<1x128xf32>
    %43 = arith.select %36, %12, %42 : vector<1x128xi1>, vector<1x128xf32>
    %cst_8 = arith.constant 0.000000e+00 : f32
    %44 = vector.broadcast %cst_8 : f32 to vector<1x128xf32>
    %45 = arith.select %36, %32, %44 : vector<1x128xi1>, vector<1x128xf32>
    %46 = arith.andi %36, %41 : vector<1x128xi1>
    %cst_9 = arith.constant 1.000000e+00 : f32
    %cst_10 = arith.constant 0.000000e+00 : f32
    %47 = vector.broadcast %cst_9 : f32 to vector<1x128xf32>
    %48 = vector.broadcast %cst_10 : f32 to vector<1x128xf32>
    %49 = arith.select %46, %47, %48 : vector<1x128xi1>, vector<1x128xf32>
    %50 = tpu.concatenate %43, %45, %49 in 0 : vector<1x128xf32>, vector<1x128xf32>, vector<1x128xf32> -> vector<3x128xf32>
    %cst_11 = arith.constant dense<0.000000e+00> : vector<3xf32>
    %51 = vector.multi_reduction <add>, %50, %cst_11 [1] : vector<3x128xf32> to vector<3xf32>
    %52 = vector.shape_cast %51 : vector<3xf32> to vector<3x1xf32>
    %53 = vector.extract_strided_slice %52 {offsets = [0, 0], sizes = [1, 1], strides = [1, 1]} : vector<3x1xf32> to vector<1x1xf32>
    %54 = vector.shape_cast %53 : vector<1x1xf32> to vector<1x1x1xf32>
    %cst_12 = arith.constant dense<0.000000e+00> : vector<1xf32>
    %55 = vector.multi_reduction <add>, %54, %cst_12 [1, 2] : vector<1x1x1xf32> to vector<1xf32>
    %56 = vector.shape_cast %55 : vector<1xf32> to vector<1x1x1xf32>
    %57 = vector.extract %56[0, 0, 0] : f32 from vector<1x1x1xf32>
    %58 = vector.extract_strided_slice %52 {offsets = [1, 0], sizes = [1, 1], strides = [1, 1]} : vector<3x1xf32> to vector<1x1xf32>
    %59 = vector.shape_cast %58 : vector<1x1xf32> to vector<1x1x1xf32>
    %cst_13 = arith.constant dense<0.000000e+00> : vector<1xf32>
    %60 = vector.multi_reduction <add>, %59, %cst_13 [1, 2] : vector<1x1x1xf32> to vector<1xf32>
    %61 = vector.shape_cast %60 : vector<1xf32> to vector<1x1x1xf32>
    %62 = vector.extract %61[0, 0, 0] : f32 from vector<1x1x1xf32>
    %63 = vector.extract_strided_slice %52 {offsets = [2, 0], sizes = [1, 1], strides = [1, 1]} : vector<3x1xf32> to vector<1x1xf32>
    %64 = vector.shape_cast %63 : vector<1x1xf32> to vector<1x1x1xf32>
    %cst_14 = arith.constant dense<0.000000e+00> : vector<1xf32>
    %65 = vector.multi_reduction <add>, %64, %cst_14 [1, 2] : vector<1x1x1xf32> to vector<1xf32>
    %66 = vector.shape_cast %65 : vector<1xf32> to vector<1x1x1xf32>
    %67 = vector.extract %66[0, 0, 0] : f32 from vector<1x1x1xf32>
    %c0_15 = arith.constant 0 : index
    %68 = memref.load %arg3[%c0_15] : memref<1xf32, #tpu.memory_space<smem>>
    %cst_16 = arith.constant 1.000000e+00 : f32
    %69 = arith.divf %cst_16, %67 : f32
    %70 = arith.mulf %68, %57 : f32
    %cst_17 = arith.constant 1.000000e+00 : f32
    %71 = arith.subf %cst_17, %68 : f32
    %72 = arith.mulf %71, %62 : f32
    %73 = arith.addf %70, %72 : f32
    %74 = arith.mulf %73, %69 : f32
    %c0_18 = arith.constant 0 : index
    %75 = memref.load %arg4[%c0_18] : memref<4xf32, #tpu.memory_space<smem>>
    memref.store %74, %arg4[%c0_18] : memref<4xf32, #tpu.memory_space<smem>>
    %76 = arith.mulf %57, %69 : f32
    %c1 = arith.constant 1 : index
    %77 = memref.load %arg4[%c1] : memref<4xf32, #tpu.memory_space<smem>>
    memref.store %76, %arg4[%c1] : memref<4xf32, #tpu.memory_space<smem>>
    %78 = arith.mulf %62, %69 : f32
    %c2 = arith.constant 2 : index
    %79 = memref.load %arg4[%c2] : memref<4xf32, #tpu.memory_space<smem>>
    memref.store %78, %arg4[%c2] : memref<4xf32, #tpu.memory_space<smem>>
    %c3 = arith.constant 3 : index
    %80 = memref.load %arg4[%c3] : memref<4xf32, #tpu.memory_space<smem>>
    memref.store %67, %arg4[%c3] : memref<4xf32, #tpu.memory_space<smem>>
    return
  }
}

</mosaic_0001>

<llo_original>
// kernel: mul.1
$region0: #{mul.1}
  #allocation2 [shape = 's32[1]{0}', space=sflag, size = 0x4, scoped, tag = 'scoped memory for mul.1']
  %s0 = inlined_call_operand.vmem [shape: f32[2,8,2], index: 0, kind: input, shape index: {}]
  %s1 = inlined_call_operand.hbm [shape: f32[2,8,2], index: 1, kind: input, shape index: {}]
  %s2 = inlined_call_operand.vmem [shape: f32[2,8,2], index: 2, kind: output, shape index: {}]
  $region1: #{mul.1} parent=0
    #allocation0 [shape = 'u8[2048]{0}', space=vmem, size = 0x800, scoped, tag = 'operand span for operand 1']
    #allocation1 [shape = 's32[1]{0}', space=sflag, size = 0x4, scoped, tag = 'scoped memory for mul.1']
    %3 = vsyncpa [#allocation1], 0
    %s5 = ssub.s32 64, 64
    %6 = vsyncadd [#allocation1], %s5
    %s7 = sshll.u32 [#allocation0], 4
    %s8 = int_to_ptr.vmem [resolvable:$true] %s7
    %13 = dma.hbm_to_vmem [thread:$0]  %s1, 64, %s8, [#allocation1], 32, 32, 2
    %14 = dma.done [#allocation1], 64
    %v15 = vld [vmem:[%s0] sm:$0x3]
    %v16 = vld [vmem:[#allocation0] sm:$0x3]
    %17 = xla_tuple %v15, %v16
    %18 = xla_tuple %17
    %v19 = vmul.f32 %v15, %v16
    %20 = xla_tuple %v19
    %21 = vst [vmem:[%s2] sm:$0x3] %v19
    %s22 = scalar_lea.vmem %s0, 2
    %v23 = vld [vmem:[%s22] sm:$0x3]
    %s24 = scalar_lea.vmem [#allocation0], 2
    %v25 = vld [vmem:[%s24] sm:$0x3]
    %26 = xla_tuple %v23, %v25
    %27 = xla_tuple %26
    %v28 = vmul.f32 %v23, %v25
    %29 = xla_tuple %v28
    %s30 = scalar_lea.vmem %s2, 2
    %31 = vst [vmem:[%s30] sm:$0x3] %v28
    %32 = vsyncpa [#allocation1], 1

// kernel: _prepare_and_run.1
$region0: #{_prepare_and_run.1}
  #allocation0 [shape = 'u32[]', space=smem, size = 0x4, offset = 0x4, fixed_abs, tag = 'smem constant byte address 0x4 - core index']
  #allocation1 [shape = 'u32[144,128]{1,0:T(1,128)}', space=vmem, size = 0x12000, scoped, tag = 'internal scratch']
  #allocation2 [shape = 's32[1]{0:T(128)S(6)}', space=smem, size = 0x200, scoped, tag = 'scoped memory for _prepare_and_run.1']
  #allocation3 [shape = 'f32[1]{0:T(128)S(6)}', space=smem, size = 0x200, scoped, tag = 'scoped memory for _prepare_and_run.1']
  %s0 = inlined_call_operand.vmem [shape: f32[2,128], index: 0, kind: input, shape index: {}]
  %s1 = inlined_call_operand.vmem [shape: f32[4,128], index: 1, kind: input, shape index: {}]
  %s2 = inlined_call_operand.<no memory space> [shape: s32[1], index: 2, kind: input, shape index: {}]
  %s3 = inlined_call_operand.<no memory space> [shape: f32[1], index: 3, kind: input, shape index: {}]
  %s4 = inlined_call_operand.hbm [shape: f32[4], index: 4, kind: output, shape index: {}]
  %s5 = sld [smem:[#allocation0]]
  $region26: #{_prepare_and_run.1} parent=0
    _
  %s7 = ssub.s32 1, %s5
  %s8 = scalar_select 0, %s7, %s5
  %9 = sst [smem:[#allocation2]] %s2
  %10 = sst [smem:[#allocation3]] %s3
  $region1: #{_prepare_and_run.1} parent=0
    #allocation4 [shape = 'u8[512]{0}', space=smem, size = 0x200, scoped, tag = 'output window, operand 0, single buffered']
    #allocation5 [shape = 's32[1]{0}', space=sflag, size = 0x4, scoped, tag = 'scoped memory for _prepare_and_run.1']
    %11 = vsyncpa [#allocation5], 0
    // Predicated region
    $region2: #{_prepare_and_run.1} parent=1 // pred_check
      _
    $region3: #{_prepare_and_run.1} parent=1 // pred_check_branch
      %13 = sbr.rel (0) target = $region5
    $region4: #{_prepare_and_run.1} parent=1 // pred_region
      _
    $region5: #{_prepare_and_run.1} parent=1 // pred_fallthru
      _
    // Predicated region
    $region6: #{_prepare_and_run.1} parent=1 // pred_check
      _
    $region7: #{_prepare_and_run.1} parent=1 // pred_check_branch
      %15 = sbr.rel (0) target = $region9
    $region8: #{_prepare_and_run.1} parent=1 // pred_region
      _
    $region9: #{_prepare_and_run.1} parent=1 // pred_fallthru
      _
    // Predicated region
    $region10: #{_prepare_and_run.1} parent=1 // pred_check
      _
    $region11: #{_prepare_and_run.1} parent=1 // pred_check_branch
      %17 = sbr.rel (0) target = $region13
    $region12: #{_prepare_and_run.1} parent=1 // pred_region
      _
    $region13: #{_prepare_and_run.1} parent=1 // pred_fallthru
      _
    // Predicated region
    $region14: #{_prepare_and_run.1} parent=1 // pred_check
      _
    $region15: #{_prepare_and_run.1} parent=1 // pred_check_branch
      %19 = sbr.rel (0) target = $region17
    $region16: #{_prepare_and_run.1} parent=1 // pred_region
      _
    $region17: #{_prepare_and_run.1} parent=1 // pred_fallthru
      _
    %v20 = vld [vmem:[%s0] sm:$0x3]
    %v21 = vld [vmem:[%s1] sm:$0xf]
    %v22 = vsub.f32 %v20, %v21
    %v23 = vand.u32 2147483647, %v22
    %v25 = vrot.slane %v23, 1
    %v27 = vadd.f32 %v23, %v25
    %v29 = vrot.slane %v21, 2
    %v31 = vsub.f32 %v21, %v29
    %v32 = vsub.f32 %v20, %v29
    %v33 = vmul.f32 %v31, %v32
    %v35 = vrot.slane %v33, 1
    %v37 = vadd.f32 %v33, %v35
    %v38 = vmul.f32 %v31, %v31
    %v40 = vrot.slane %v38, 1
    %v42 = vadd.f32 %v38, %v40
    %v43 = vmul.f32 %v32, %v32
    %v45 = vrot.slane %v43, 1
    %v47 = vadd.f32 %v43, %v45
    %v48 = vmul.f32 %v42, %v47
    %v49 = vmax.f32 %v48, 1e-12
    %v50 = vrsqrt.pop %v49
    %v51 = vmul.f32 %v37, %v50
    %v52 = vsub.f32 1.0, %v51
    %v53 = vlaneseq
    %v54 = vand.u32 %v53, 127
    %s55 = sld [smem:[#allocation2]]
    %v56 = vstv %s55
    %vm57 = vcmp.lt.s32.totalorder %v54, %v56
    %vm58 = vcmp.ne.f32.partialorder %v21, 0.0
    %v59 = vsel %vm58, 1, 0
    %v60 = vrot.slane %v59, 1
    %vm61 = vcmp.ne.s32.totalorder %v60, 0
    %vm62 = vmand %vm58, %vm61
    %v63 = vsel %vm57, %v27, 0.0
    %v64 = vsel %vm57, %v52, 0.0
    %vm65 = vmand %vm57, %vm62
    %v66 = vsel %vm65, 1.0, 0.0
    %v68 = vrot.slane %v64, 7
    %v71 = vrot.slane %v66, 6
    %vm73 = vcmask 1040384
    %v74 = vsel %vm73, %v63, %v68
    %vm75 = vcmask 1041408
    %v76 = vsel %vm75, %v74, %v71
    %vm77 = vcmask 1042432
    %v78 = vsel %vm77, %v76, 0.0
    %79 = vadd.xlane.f32.xlu0 %v78
    %v80 = vpop.xlane.xlu0 %79
    %v81 = vadd.f32 %v80, 0.0
    %s82 = vtos %v81
    %v84 = vrot.slane %v81, 1
    %s86 = vtos %v84
    %v87 = vrot.slane %v81, 2
    %s89 = vtos %v87
    %s90 = sld [smem:[#allocation3]]
    %v91 = vstv %s89
    %v92 = vrcp.pop %v91
    %s93 = vtos %v92
    %s94 = smul.f32 %s90, %s82
    %s95 = ssub.f32 1.0, %s90
    %s96 = smul.f32 %s95, %s86
    %s97 = sadd.f32 %s94, %s96
    %s98 = smul.f32 %s97, %s93
    %s99 = scalar_lea.smem [#allocation4], 0
    %100 = sst [smem:[%s99]] %s98
    %s101 = smul.f32 %s82, %s93
    %s102 = scalar_lea.smem [#allocation4], 1
    %103 = sst [smem:[%s102]] %s101
    %s104 = smul.f32 %s86, %s93
    %s105 = scalar_lea.smem [#allocation4], 2
    %106 = sst [smem:[%s105]] %s104
    %s107 = scalar_lea.smem [#allocation4], 3
    %108 = sst [smem:[%s107]] %s89
    // Predicated region
    $region18: #{_prepare_and_run.1} parent=1 // pred_check
      _
    $region19: #{_prepare_and_run.1} parent=1 // pred_check_branch
      %110 = sbr.rel (0) target = $region21
    $region20: #{_prepare_and_run.1} parent=1 // pred_region
      %s112 = ssub.s32 16, 16
      %113 = vsyncadd [#allocation5], %s112
      %116 = dma.smem_to_hbm [#allocation4], 16, %s4, [#allocation5]
    $region21: #{_prepare_and_run.1} parent=1 // pred_fallthru
      _
    // Predicated region
    $region22: #{_prepare_and_run.1} parent=1 // pred_check
      _
    $region23: #{_prepare_and_run.1} parent=1 // pred_check_branch
      %118 = sbr.rel (0) target = $region25
    $region24: #{_prepare_and_run.1} parent=1 // pred_region
      %119 = dma.done [#allocation5], 16
    $region25: #{_prepare_and_run.1} parent=1 // pred_fallthru
      _
    %120 = sfence
    %121 = vsyncpa [#allocation5], 1

</llo_original>
